<compile_context>
chip_gen: v7x
topology: tpu7x:2x2x1
jax: 0.10.0
libtpu: 0.0.40
codegen_flags: <defaults>
</compile_context>

<pallas_src>
import functools

import jax
import jax.numpy as jnp
from jax.experimental import pallas as pl
from jax.experimental.pallas import tpu as pltpu


# --------------------------------------------------------------------------- #
# Kernel 1: head-batched projection
#   Wh_all = x @ W_all                      (N, H*F)   one lane-dense MXU op
#   f1     = Wh_all @ A1_blockdiag          (N, H)     per-head Wh_h @ a1_h
#   f2^T   = contract(A2T, Wh_all)          (H, N)     per-head (Wh_h @ a2_h)^T
# --------------------------------------------------------------------------- #
def _project_kernel(x_ref, w_ref, a1_ref, a2t_ref, wh_ref, f1_ref, f2t_ref):
    wh = jnp.dot(x_ref[...], w_ref[...], preferred_element_type=jnp.float32)
    wh_ref[...] = wh
    f1_ref[...] = jnp.dot(wh, a1_ref[...], preferred_element_type=jnp.float32)
    # (H, tm): contract a2t's (H*F) axis with wh's (H*F) axis -> f2 already
    # transposed, so the attention kernel needs no in-VMEM transpose.
    f2t_ref[...] = jax.lax.dot_general(
        a2t_ref[...], wh, (((1,), (1,)), ((), ())),
        preferred_element_type=jnp.float32)


# --------------------------------------------------------------------------- #
# Kernel 2: tiled masked attention + online softmax + ELU, all heads per step.
# Grid = (N // tq, N // tkv); kv axis is the reduction ("arbitrary").
# --------------------------------------------------------------------------- #
def _attention_kernel(f1_ref, f2t_ref, adj_ref, wh_ref, o_ref,
                      m_ref, l_ref, acc_ref, *, alpha, nheads, fout):
    kv = pl.program_id(1)

    @pl.when(kv == 0)
    def _init():
        m_ref[...] = jnp.full_like(m_ref, -jnp.inf)
        l_ref[...] = jnp.zeros_like(l_ref)
        acc_ref[...] = jnp.zeros_like(acc_ref)

    mask = adj_ref[...] > 0            # (tq, tkv) bool, from int8 adjacency
    f1 = f1_ref[...]                   # (tq, H)
    f2t = f2t_ref[...]                 # (H, tkv)
    wh = wh_ref[...]                   # (tkv, H*F)

    for h in range(nheads):            # nheads is small & static (unrolled)
        e = f1[:, h:h + 1] + f2t[h:h + 1, :]                 # (tq, tkv)
        e = jnp.where(e > 0, e, alpha * e)                   # LeakyReLU
        e = jnp.where(mask, e, -9e15)                        # adjacency mask
        m_prev = m_ref[h]                                    # (tq, 1)
        m_new = jnp.maximum(m_prev, jnp.max(e, axis=1, keepdims=True))
        p = jnp.exp(e - m_new)                               # (tq, tkv)
        corr = jnp.exp(m_prev - m_new)                       # (tq, 1)
        l_ref[h] = corr * l_ref[h] + jnp.sum(p, axis=1, keepdims=True)
        acc_ref[h] = corr * acc_ref[h] + jnp.dot(
            p, wh[:, h * fout:(h + 1) * fout],
            preferred_element_type=jnp.float32)
        m_ref[h] = m_new

    @pl.when(kv == pl.num_programs(1) - 1)
    def _finalize():
        cols = []
        for h in range(nheads):
            cols.append(acc_ref[h] * pl.reciprocal(l_ref[h], approx=False))
        hp = jnp.concatenate(cols, axis=-1)                  # (tq, H*F)
        # ELU(alpha=1) because concat=True for every layer of this model.
        o_ref[...] = jnp.where(hp > 0, hp, jnp.expm1(hp))    # lane-dense store


# --------------------------------------------------------------------------- #
# Wrappers
# --------------------------------------------------------------------------- #
def _pick_tile(n, target):
    """Largest multiple of 128 <= target that divides n, else n (no tiling)."""
    if n <= target:
        return n
    t = (target // 128) * 128
    while t >= 128:
        if n % t == 0:
            return t
        t -= 128
    return n


def gat_multihead_layer(x, adj_i8, w_all, a1_blk, a2t_blk, nheads, fout, alpha,
                        *, tq_target=256, tkv_target=512):
    """One multi-head dense GAT layer. Returns [N, nheads*fout] (heads concat)."""
    n, fin = x.shape
    hf = nheads * fout

    # ---- projection: Wh (all heads) + attention logits f1, f2^T ------------
    tm = _pick_tile(n, tq_target)
    wh, f1, f2t = pl.pallas_call(
        _project_kernel,
        out_shape=(
            jax.ShapeDtypeStruct((n, hf), jnp.float32),
            jax.ShapeDtypeStruct((n, nheads), jnp.float32),
            jax.ShapeDtypeStruct((nheads, n), jnp.float32),
        ),
        grid=(n // tm,),
        in_specs=[
            pl.BlockSpec((tm, fin), lambda i: (i, 0)),
            pl.BlockSpec((fin, hf), lambda i: (0, 0)),
            pl.BlockSpec((hf, nheads), lambda i: (0, 0)),
            pl.BlockSpec((nheads, hf), lambda i: (0, 0)),
        ],
        out_specs=(
            pl.BlockSpec((tm, hf), lambda i: (i, 0)),
            pl.BlockSpec((tm, nheads), lambda i: (i, 0)),
            pl.BlockSpec((nheads, tm), lambda i: (0, i)),
        ),
        compiler_params=pltpu.CompilerParams(
            dimension_semantics=("parallel",)),
    )(x, w_all, a1_blk, a2t_blk)

    # ---- tiled attention with online softmax --------------------------------
    tq = _pick_tile(n, tq_target)
    tkv = _pick_tile(n, tkv_target)
    out = pl.pallas_call(
        functools.partial(_attention_kernel, alpha=alpha,
                          nheads=nheads, fout=fout),
        out_shape=jax.ShapeDtypeStruct((n, hf), jnp.float32),
        grid=(n // tq, n // tkv),
        in_specs=[
            pl.BlockSpec((tq, nheads), lambda i, j: (i, 0)),     # f1
            pl.BlockSpec((nheads, tkv), lambda i, j: (0, j)),    # f2^T
            pl.BlockSpec((tq, tkv), lambda i, j: (i, j)),        # adj (int8)
            pl.BlockSpec((tkv, hf), lambda i, j: (j, 0)),        # Wh
        ],
        out_specs=pl.BlockSpec((tq, hf), lambda i, j: (i, 0)),
        scratch_shapes=[
            pltpu.VMEM((nheads, tq, 1), jnp.float32),     # running max m
            pltpu.VMEM((nheads, tq, 1), jnp.float32),     # running sum l
            pltpu.VMEM((nheads, tq, fout), jnp.float32),  # output accumulator
        ],
        compiler_params=pltpu.CompilerParams(
            dimension_semantics=("parallel", "arbitrary")),
    )(f1, f2t, adj_i8, wh)
    return out


def init_gat_params(key, nfeat, nhid, nclass, nheads):
    """Deterministic xavier-uniform-ish init for the 4 layers of the GAT."""
    dims = [(nfeat, nhid), (nhid * nheads, nhid),
            (nhid * nheads, nhid), (nhid * nheads, nclass)]
    params = []
    for (fin, fout) in dims:
        key, kw, ka = jax.random.split(key, 3)
        gain_w = jnp.sqrt(6.0 / (fin + fout))
        W = jax.random.uniform(kw, (nheads, fin, fout), jnp.float32,
                               minval=-gain_w, maxval=gain_w)
        gain_a = jnp.sqrt(6.0 / (2 * fout + 1))
        a = jax.random.uniform(ka, (nheads, 2 * fout), jnp.float32,
                               minval=-gain_a, maxval=gain_a)
        params.append((W, a))
    return params


def pack_layer_params(W, a):
    """Head-batched parameter layout for the kernels."""
    nheads, fin, fout = W.shape
    w_all = jnp.transpose(W, (1, 0, 2)).reshape(fin, nheads * fout)  # (Fin,H*F)
    eye = jnp.eye(nheads, dtype=W.dtype)
    a1 = a[:, :fout]                                                 # (H, F)
    a2 = a[:, fout:]                                                 # (H, F)
    # Block-diagonal so that Wh_all @ a1_blk == [Wh_h @ a1_h]_h per column.
    a1_blk = (a1[:, :, None] * eye[:, None, :]).reshape(nheads * fout, nheads)
    a2_blk = (a2[:, :, None] * eye[:, None, :]).reshape(nheads * fout, nheads)
    a2t_blk = a2_blk.T                                               # (H, H*F)
    return w_all, a1_blk, a2t_blk, nheads, fout


def gat_forward(x, adj, params, alpha, *, tq_target=256, tkv_target=512):
    # F.dropout in eval mode == identity between layers.
    adj_i8 = (adj > 0).astype(jnp.int8)   # mask shipped as int8 (4x less traffic)
    for (W, a) in params:
        w_all, a1_blk, a2t_blk, nheads, fout = pack_layer_params(W, a)
        x = gat_multihead_layer(x, adj_i8, w_all, a1_blk, a2t_blk, nheads,
                                fout, alpha, tq_target=tq_target,
                                tkv_target=tkv_target)
    return x


def _gat_reference(x, adj, params, alpha):
    """Pure-jnp reference for sanity checking."""
    for (W, a) in params:
        nheads, _, fout = W.shape
        heads = []
        for h in range(nheads):
            Wh = x @ W[h]
            a1 = a[h, :fout].reshape(fout, 1)
            a2 = a[h, fout:].reshape(fout, 1)
            e = Wh @ a1 + (Wh @ a2).T
            e = jnp.where(e > 0, e, alpha * e)
            e = jnp.where(adj > 0, e, -9e15)
            att = jax.nn.softmax(e, axis=1)
            hp = att @ Wh
            heads.append(jnp.where(hp > 0, hp, jnp.expm1(hp)))
        x = jnp.concatenate(heads, axis=1)
    return x


if __name__ == "__main__":
    def run_case(N, nfeat, nhid, nclass, nheads, tq_target, tkv_target, tol):
        alpha = 0.2
        key = jax.random.PRNGKey(0)
        kx, kadj, kp = jax.random.split(key, 3)
        x = jax.random.normal(kx, (N, nfeat), jnp.float32)
        adj = (jax.random.uniform(kadj, (N, N)) > 0.5).astype(jnp.float32)
        adj = jnp.maximum(adj, jnp.eye(N, dtype=jnp.float32))  # self loops
        params = init_gat_params(kp, nfeat, nhid, nclass, nheads)

        out = gat_forward(x, adj, params, alpha,
                          tq_target=tq_target, tkv_target=tkv_target)
        out = jax.block_until_ready(out)

        ref = _gat_reference(x, adj, params, alpha)
        assert out.shape == (N, nheads * nclass), out.shape
        err = float(jnp.max(jnp.abs(out - ref)))
        assert jnp.allclose(out, ref, atol=tol, rtol=tol), err

    # Small case: single-tile grid (full blocks).
    run_case(N=8, nfeat=16, nhid=8, nclass=4, nheads=2,
             tq_target=256, tkv_target=512, tol=1e-4)
    # Tiled case: exercises the (q, kv) grid and the online softmax carry.
    run_case(N=256, nfeat=64, nhid=8, nclass=8, nheads=4,
             tq_target=128, tkv_target=128, tol=1e-3)

    print("KERNEL_OK")
</pallas_src>

<mosaic_0001>
module attributes {stable_mosaic.version = 11 : i64} {
  func.func @_project_kernel(%arg0: i32, %arg1: memref<8x16xf32, #tpu.memory_space<vmem>>, %arg2: memref<16x16xf32, #tpu.memory_space<vmem>>, %arg3: memref<16x2xf32, #tpu.memory_space<vmem>>, %arg4: memref<2x16xf32, #tpu.memory_space<vmem>>, %arg5: memref<8x16xf32, #tpu.memory_space<vmem>>, %arg6: memref<8x2xf32, #tpu.memory_space<vmem>>, %arg7: memref<2x8xf32, #tpu.memory_space<vmem>>) attributes {dimension_semantics = [#tpu.dimension_semantics<parallel>], iteration_bounds = array<i64: 1>, scalar_prefetch = 0 : i64, scratch_operands = 0 : i64, tpu.core_type = #tpu.core_type<tc>, window_params = [{transform_indices = @transform_0, window_bounds = array<i64: 8, 16>}, {pipeline_mode = #tpu.pipeline_mode<synchronous>, transform_indices = @transform_1, window_bounds = array<i64: 16, 16>}, {pipeline_mode = #tpu.pipeline_mode<synchronous>, transform_indices = @transform_2, window_bounds = array<i64: 16, 2>}, {pipeline_mode = #tpu.pipeline_mode<synchronous>, transform_indices = @transform_3, window_bounds = array<i64: 2, 16>}, {transform_indices = @transform_4, window_bounds = array<i64: 8, 16>}, {transform_indices = @transform_5, window_bounds = array<i64: 8, 2>}, {transform_indices = @transform_6, window_bounds = array<i64: 2, 8>}]} {
    %c0 = arith.constant 0 : index
    %c0_0 = arith.constant 0 : index
    %0 = vector.load %arg1[%c0, %c0_0] : memref<8x16xf32, #tpu.memory_space<vmem>>, vector<8x16xf32>
    %c0_1 = arith.constant 0 : index
    %c0_2 = arith.constant 0 : index
    %1 = vector.load %arg2[%c0_1, %c0_2] : memref<16x16xf32, #tpu.memory_space<vmem>>, vector<16x16xf32>
    %cst = arith.constant dense<0.000000e+00> : vector<8x16xf32>
    %2 = tpu.matmul %0, %1, %cst {dimension_numbers = #tpu.dot_dimension_numbers<[1], [0], [0], [1], [0, 0, 1, 1], [], []>} : vector<8x16xf32>, vector<16x16xf32>, vector<8x16xf32> -> vector<8x16xf32>
    %c0_3 = arith.constant 0 : index
    %c0_4 = arith.constant 0 : index
    %3 = vector.load %arg5[%c0_3, %c0_4] : memref<8x16xf32, #tpu.memory_space<vmem>>, vector<8x16xf32>
    tpu.vector_store %arg5[%c0_3, %c0_4], %2 {strides = array<i32>} : memref<8x16xf32, #tpu.memory_space<vmem>>, vector<8x16xf32>,
    %c0_5 = arith.constant 0 : index
    %c0_6 = arith.constant 0 : index
    %4 = vector.load %arg3[%c0_5, %c0_6] : memref<16x2xf32, #tpu.memory_space<vmem>>, vector<16x2xf32>
    %cst_7 = arith.constant dense<0.000000e+00> : vector<8x2xf32>
    %5 = tpu.matmul %2, %4, %cst_7 {dimension_numbers = #tpu.dot_dimension_numbers<[1], [0], [0], [1], [0, 0, 1, 1], [], []>} : vector<8x16xf32>, vector<16x2xf32>, vector<8x2xf32> -> vector<8x2xf32>
    %c0_8 = arith.constant 0 : index
    %c0_9 = arith.constant 0 : index
    %6 = vector.load %arg6[%c0_8, %c0_9] : memref<8x2xf32, #tpu.memory_space<vmem>>, vector<8x2xf32>
    tpu.vector_store %arg6[%c0_8, %c0_9], %5 {strides = array<i32>} : memref<8x2xf32, #tpu.memory_space<vmem>>, vector<8x2xf32>,
    %c0_10 = arith.constant 0 : index
    %c0_11 = arith.constant 0 : index
    %7 = vector.load %arg4[%c0_10, %c0_11] : memref<2x16xf32, #tpu.memory_space<vmem>>, vector<2x16xf32>
    %cst_12 = arith.constant dense<0.000000e+00> : vector<2x8xf32>
    %8 = tpu.matmul %7, %2, %cst_12 {dimension_numbers = #tpu.dot_dimension_numbers<[1], [1], [0], [0], [0, 0, 1, 0], [], []>} : vector<2x16xf32>, vector<8x16xf32>, vector<2x8xf32> -> vector<2x8xf32>
    %c0_13 = arith.constant 0 : index
    %c0_14 = arith.constant 0 : index
    %9 = vector.load %arg7[%c0_13, %c0_14] : memref<2x8xf32, #tpu.memory_space<vmem>>, vector<2x8xf32>
    tpu.vector_store %arg7[%c0_13, %c0_14], %8 {strides = array<i32>} : memref<2x8xf32, #tpu.memory_space<vmem>>, vector<2x8xf32>,
    return
  }
  func.func @transform_0(%arg0: i32) -> (i32, i32) {
    %c0_i32 = arith.constant 0 : i32
    %c0_i32_0 = arith.constant 0 : i32
    return %arg0, %c0_i32 : i32, i32
  }
  func.func @transform_1(%arg0: i32) -> (i32, i32) {
    %c0_i32 = arith.constant 0 : i32
    %c0_i32_0 = arith.constant 0 : i32
    %c0_i32_1 = arith.constant 0 : i32
    return %c0_i32, %c0_i32_0 : i32, i32
  }
  func.func @transform_2(%arg0: i32) -> (i32, i32) {
    %c0_i32 = arith.constant 0 : i32
    %c0_i32_0 = arith.constant 0 : i32
    %c0_i32_1 = arith.constant 0 : i32
    return %c0_i32, %c0_i32_0 : i32, i32
  }
  func.func @transform_3(%arg0: i32) -> (i32, i32) {
    %c0_i32 = arith.constant 0 : i32
    %c0_i32_0 = arith.constant 0 : i32
    %c0_i32_1 = arith.constant 0 : i32
    return %c0_i32, %c0_i32_0 : i32, i32
  }
  func.func @transform_4(%arg0: i32) -> (i32, i32) {
    %c0_i32 = arith.constant 0 : i32
    %c0_i32_0 = arith.constant 0 : i32
    return %arg0, %c0_i32 : i32, i32
  }
  func.func @transform_5(%arg0: i32) -> (i32, i32) {
    %c0_i32 = arith.constant 0 : i32
    %c0_i32_0 = arith.constant 0 : i32
    return %arg0, %c0_i32 : i32, i32
  }
  func.func @transform_6(%arg0: i32) -> (i32, i32) {
    %c0_i32 = arith.constant 0 : i32
    %c0_i32_0 = arith.constant 0 : i32
    return %c0_i32, %arg0 : i32, i32
  }
}

</mosaic_0001>

<llo_original>
// kernel: tpu_custom_call.1
$region0: #{tpu_custom_call.1}
  #allocation0 [shape = 'u32[]', space=smem, size = 0x4, offset = 0x4, fixed_abs, tag = 'smem constant byte address 0x4 - core index']
  #allocation1 [shape = 'u32[144,128]{1,0:T(1,128)}', space=vmem, size = 0x12000, scoped, tag = 'internal scratch']
  %s0 = inlined_call_operand.hbm [shape: f32[8,16], index: 0, kind: input, shape index: {}]
  %s1 = inlined_call_operand.vmem [shape: f32[16,16], index: 1, kind: input, shape index: {}]
  %s2 = inlined_call_operand.vmem [shape: f32[16,2], index: 2, kind: input, shape index: {}]
  %s3 = inlined_call_operand.vmem [shape: f32[2,16], index: 3, kind: input, shape index: {}]
  %s4 = inlined_call_operand.hbm [shape: f32[8,16], index: 4, kind: output, shape index: {0}]
  %s5 = inlined_call_operand.vmem [shape: f32[8,2], index: 5, kind: output, shape index: {1}]
  %s6 = inlined_call_operand.hbm [shape: f32[2,8], index: 6, kind: output, shape index: {2}]
  %7 = xla_tuple %s4, %s5, %s6
  %s8 = sld [smem:[#allocation0]]
  $region46: #{tpu_custom_call.1} parent=0
    _
  %s10 = ssub.s32 1, %s8
  %s11 = scalar_select 0, %s10, %s8
  $region1: #{tpu_custom_call.1} parent=0
    #allocation2 [shape = 'u8[4096]{0}', space=vmem, size = 0x1000, scoped, tag = 'input window, operand 0, single buffered']
    #allocation3 [shape = 's32[1]{0}', space=sflag, size = 0x4, scoped, tag = 'scoped memory for tpu_custom_call.1']
    #allocation4 [shape = 's32[1]{0}', space=sflag, size = 0x4, scoped, tag = 'scoped memory for tpu_custom_call.1']
    #allocation5 [shape = 'u8[4096]{0}', space=vmem, size = 0x1000, scoped, tag = 'output window, operand 0, single buffered']
    #allocation6 [shape = 'u8[1024]{0}', space=vmem, size = 0x400, scoped, tag = 'output window, operand 2, single buffered']
    #allocation7 [shape = 's32[1]{0}', space=sflag, size = 0x4, scoped, tag = 'scoped memory for tpu_custom_call.1']
    %12 = vsyncpa [#allocation3], 0
    %13 = vsyncpa [#allocation4], 0
    %14 = vsyncpa [#allocation7], 0
    // Predicated region
    $region2: #{tpu_custom_call.1} parent=1 // pred_check
      _
    $region3: #{tpu_custom_call.1} parent=1 // pred_check_branch
      %16 = sbr.rel (0) target = $region5
    $region4: #{tpu_custom_call.1} parent=1 // pred_region
      %s18 = ssub.s32 128, 128
      %19 = vsyncadd [#allocation3], %s18
      %s21 = sshll.u32 [#allocation2], 4
      %s22 = int_to_ptr.vmem [resolvable:$true] %s21
      %24 = dma.hbm_to_vmem [thread:$0]  %s0, 128, %s22, [#allocation3]
    $region5: #{tpu_custom_call.1} parent=1 // pred_fallthru
      _
    // Predicated region
    $region6: #{tpu_custom_call.1} parent=1 // pred_check
      _
    $region7: #{tpu_custom_call.1} parent=1 // pred_check_branch
      %26 = sbr.rel (0) target = $region9
    $region8: #{tpu_custom_call.1} parent=1 // pred_region
      _
    $region9: #{tpu_custom_call.1} parent=1 // pred_fallthru
      _
    // Predicated region
    $region10: #{tpu_custom_call.1} parent=1 // pred_check
      _
    $region11: #{tpu_custom_call.1} parent=1 // pred_check_branch
      %28 = sbr.rel (0) target = $region13
    $region12: #{tpu_custom_call.1} parent=1 // pred_region
      _
    $region13: #{tpu_custom_call.1} parent=1 // pred_fallthru
      _
    // Predicated region
    $region14: #{tpu_custom_call.1} parent=1 // pred_check
      _
    $region15: #{tpu_custom_call.1} parent=1 // pred_check_branch
      %30 = sbr.rel (0) target = $region17
    $region16: #{tpu_custom_call.1} parent=1 // pred_region
      _
    $region17: #{tpu_custom_call.1} parent=1 // pred_fallthru
      _
    // Predicated region
    $region18: #{tpu_custom_call.1} parent=1 // pred_check
      _
    $region19: #{tpu_custom_call.1} parent=1 // pred_check_branch
      %32 = sbr.rel (0) target = $region21
    $region20: #{tpu_custom_call.1} parent=1 // pred_region
      %33 = dma.done [#allocation3], 128
    $region21: #{tpu_custom_call.1} parent=1 // pred_fallthru
      _
    %v34 = vld [vmem:[#allocation2] sm:$0xff]
    %v35 = vld [vmem:[%s1] sm:$0xff]
    %v36 = vld [vmem:[%s1 + $0x8] sm:$0xff]
    %vm37 = vcmask 130048
    %v39 = vsel %vm37, %v34, 0
    %41 = vmatprep.subr.mxu0 0.0
    %42 = vmatpush1.msra.mxu0 %v35
    %43 = vmatprep.subr.mxu0 0.0
    %44 = vmatpush1.msra.mxu0 %v36
    %45 = vmatprep.subr.mxu0 0.0
    %46 = vmatpush1.msra.mxu0 0.0
    %47 = vmatprep.subr.mxu0 0.0
    %48 = vmatpush1.msra.mxu0 0.0
    %49 = vmatprep.subr.mxu0 0.0
    %50 = vmatpush1.msra.mxu0 0.0
    %51 = vmatprep.subr.mxu0 0.0
    %52 = vmatpush1.msra.mxu0 0.0
    %53 = vmatprep.subr.mxu0 0.0
    %54 = vmatpush1.msra.mxu0 0.0
    %55 = vmatprep.subr.mxu0 0.0
    %56 = vmatpush1.msra.mxu0 0.0
    %57 = vmatprep.subr.mxu0 0.0
    %58 = vmatpush1.msra.mxu0 0.0
    %59 = vmatprep.subr.mxu0 0.0
    %60 = vmatpush1.msra.mxu0 0.0
    %61 = vmatprep.subr.mxu0 0.0
    %62 = vmatpush1.msra.mxu0 0.0
    %63 = vmatprep.subr.mxu0 0.0
    %64 = vmatpush1.msra.mxu0 0.0
    %65 = vmatprep.subr.mxu0 0.0
    %66 = vmatpush1.msra.mxu0 0.0
    %67 = vmatprep.subr.mxu0 0.0
    %68 = vmatpush1.msra.mxu0 0.0
    %69 = vmatprep.subr.mxu0 0.0
    %70 = vmatpush1.msra.mxu0 0.0
    %71 = vmatprep.subr.mxu0 0.0
    %72 = vmatpush1.msra.mxu0 0.0
    %73 = vmatprep.subr.mxu0 0.0
    %74 = vmatpush1.msra.mxu0 0.0
    %75 = vmatprep.subr.mxu0 0.0
    %76 = vmatpush1.msra.mxu0 0.0
    %77 = vmatprep.subr.mxu0 0.0
    %78 = vmatpush1.msra.mxu0 0.0
    %79 = vmatprep.subr.mxu0 0.0
    %80 = vmatpush1.msra.mxu0 0.0
    %81 = vmatprep.subr.mxu0 0.0
    %82 = vmatpush1.msra.mxu0 0.0
    %83 = vmatprep.subr.mxu0 0.0
    %84 = vmatpush1.msra.mxu0 0.0
    %85 = vmatprep.subr.mxu0 0.0
    %86 = vmatpush1.msra.mxu0 0.0
    %87 = vmatprep.subr.mxu0 0.0
    %88 = vmatpush1.msra.mxu0 0.0
    %89 = vmatprep.subr.mxu0 0.0
    %90 = vmatpush1.msra.mxu0 0.0
    %91 = vmatprep.subr.mxu0 0.0
    %92 = vmatpush1.msra.mxu0 0.0
    %93 = vmatprep.subr.mxu0 0.0
    %94 = vmatpush1.msra.mxu0 0.0
    %95 = vmatprep.subr.mxu0 0.0
    %96 = vmatpush1.msra.mxu0 0.0
    %97 = vmatprep.subr.mxu0 0.0
    %98 = vmatpush1.msra.mxu0 0.0
    %99 = vmatprep.subr.mxu0 0.0
    %100 = vmatpush1.msra.mxu0 0.0
    %101 = vmatprep.subr.mxu0 0.0
    %102 = vmatpush1.msra.mxu0 0.0
    %103 = vmatprep.subr.mxu0 0.0
    %104 = vmatpush1.msra.mxu0 0.0
    %105 = vmatprep.mubr.f32.mxu0 0.0
    %106 = vmatmul.mubr.f32.gmra.mrb[0].mxu0 %v39
    %v107 = vpop.f32.mrb[0].mxu0
    %v108 = vadd.f32 0.0, %v107
    %v109 = vpop.f32.mrb[0].mxu0
    %110 = vdwg.mxu0
    %111 = vst.msk [vmem:[#allocation5] sm:$0xff] %vm37, %v108
    %v112 = vld [vmem:[%s2] sm:$0xff]
    %v113 = vld [vmem:[%s2 + $0x8] sm:$0xff]
    %v115 = vsel %vm37, %v108, 0
    %117 = vmatprep.subr.mxu0 0.0
    %118 = vmatpush1.msra.mxu0 %v112
    %119 = vmatprep.subr.mxu0 0.0
    %120 = vmatpush1.msra.mxu0 %v113
    %121 = vmatprep.subr.mxu0 0.0
    %122 = vmatpush1.msra.mxu0 0.0
    %123 = vmatprep.subr.mxu0 0.0
    %124 = vmatpush1.msra.mxu0 0.0
    %125 = vmatprep.subr.mxu0 0.0
    %126 = vmatpush1.msra.mxu0 0.0
    %127 = vmatprep.subr.mxu0 0.0
    %128 = vmatpush1.msra.mxu0 0.0
    %129 = vmatprep.subr.mxu0 0.0
    %130 = vmatpush1.msra.mxu0 0.0
    %131 = vmatprep.subr.mxu0 0.0
    %132 = vmatpush1.msra.mxu0 0.0
    %133 = vmatprep.subr.mxu0 0.0
    %134 = vmatpush1.msra.mxu0 0.0
    %135 = vmatprep.subr.mxu0 0.0
    %136 = vmatpush1.msra.mxu0 0.0
    %137 = vmatprep.subr.mxu0 0.0
    %138 = vmatpush1.msra.mxu0 0.0
    %139 = vmatprep.subr.mxu0 0.0
    %140 = vmatpush1.msra.mxu0 0.0
    %141 = vmatprep.subr.mxu0 0.0
    %142 = vmatpush1.msra.mxu0 0.0
    %143 = vmatprep.subr.mxu0 0.0
    %144 = vmatpush1.msra.mxu0 0.0
    %145 = vmatprep.subr.mxu0 0.0
    %146 = vmatpush1.msra.mxu0 0.0
    %147 = vmatprep.subr.mxu0 0.0
    %148 = vmatpush1.msra.mxu0 0.0
    %149 = vmatprep.subr.mxu0 0.0
    %150 = vmatpush1.msra.mxu0 0.0
    %151 = vmatprep.subr.mxu0 0.0
    %152 = vmatpush1.msra.mxu0 0.0
    %153 = vmatprep.subr.mxu0 0.0
    %154 = vmatpush1.msra.mxu0 0.0
    %155 = vmatprep.subr.mxu0 0.0
    %156 = vmatpush1.msra.mxu0 0.0
    %157 = vmatprep.subr.mxu0 0.0
    %158 = vmatpush1.msra.mxu0 0.0
    %159 = vmatprep.subr.mxu0 0.0
    %160 = vmatpush1.msra.mxu0 0.0
    %161 = vmatprep.subr.mxu0 0.0
    %162 = vmatpush1.msra.mxu0 0.0
    %163 = vmatprep.subr.mxu0 0.0
    %164 = vmatpush1.msra.mxu0 0.0
    %165 = vmatprep.subr.mxu0 0.0
    %166 = vmatpush1.msra.mxu0 0.0
    %167 = vmatprep.subr.mxu0 0.0
    %168 = vmatpush1.msra.mxu0 0.0
    %169 = vmatprep.subr.mxu0 0.0
    %170 = vmatpush1.msra.mxu0 0.0
    %171 = vmatprep.subr.mxu0 0.0
    %172 = vmatpush1.msra.mxu0 0.0
    %173 = vmatprep.subr.mxu0 0.0
    %174 = vmatpush1.msra.mxu0 0.0
    %175 = vmatprep.subr.mxu0 0.0
    %176 = vmatpush1.msra.mxu0 0.0
    %177 = vmatprep.subr.mxu0 0.0
    %178 = vmatpush1.msra.mxu0 0.0
    %179 = vmatprep.subr.mxu0 0.0
    %180 = vmatpush1.msra.mxu0 0.0
    %181 = vmatprep.mubr.f32.mxu0 0.0
    %182 = vmatmul.mubr.f32.gmra.mrb[0].mxu0 %v115
    %v183 = vpop.f32.mrb[0].mxu0
    %v184 = vadd.f32 0.0, %v183
    %v185 = vpop.f32.mrb[0].mxu0
    %186 = vdwg.mxu0
    %vm187 = vcmask 15360
    %188 = vst.msk [vmem:[%s5] sm:$0xff] %vm187, %v184
    %v189 = vld [vmem:[%s3] sm:$0x3]
    %v191 = vsel %vm37, %v189, 0
    %193 = vmatprep.subr.mxu0 0.0
    %194 = vmatpush1.xpose.msra.mxu0 %v115
    %195 = vmatprep.subr.mxu0 0.0
    %196 = vmatpush1.xpose.msra.mxu0 0.0
    %197 = vmatprep.subr.mxu0 0.0
    %198 = vmatpush1.xpose.msra.mxu0 0.0
    %199 = vmatprep.subr.mxu0 0.0
    %200 = vmatpush1.xpose.msra.mxu0 0.0
    %201 = vmatprep.subr.mxu0 0.0
    %202 = vmatpush1.xpose.msra.mxu0 0.0
    %203 = vmatprep.subr.mxu0 0.0
    %204 = vmatpush1.xpose.msra.mxu0 0.0
    %205 = vmatprep.subr.mxu0 0.0
    %206 = vmatpush1.xpose.msra.mxu0 0.0
    %207 = vmatprep.subr.mxu0 0.0
    %208 = vmatpush1.xpose.msra.mxu0 0.0
    %209 = vmatprep.subr.mxu0 0.0
    %210 = vmatpush1.xpose.msra.mxu0 0.0
    %211 = vmatprep.subr.mxu0 0.0
    %212 = vmatpush1.xpose.msra.mxu0 0.0
    %213 = vmatprep.subr.mxu0 0.0
    %214 = vmatpush1.xpose.msra.mxu0 0.0
    %215 = vmatprep.subr.mxu0 0.0
    %216 = vmatpush1.xpose.msra.mxu0 0.0
    %217 = vmatprep.subr.mxu0 0.0
    %218 = vmatpush1.xpose.msra.mxu0 0.0
    %219 = vmatprep.subr.mxu0 0.0
    %220 = vmatpush1.xpose.msra.mxu0 0.0
    %221 = vmatprep.subr.mxu0 0.0
    %222 = vmatpush1.xpose.msra.mxu0 0.0
    %223 = vmatprep.subr.mxu0 0.0
    %224 = vmatpush1.xpose.msra.mxu0 0.0
    %225 = vmatprep.subr.mxu0 0.0
    %226 = vmatpush1.xpose.msra.mxu0 0.0
    %227 = vmatprep.subr.mxu0 0.0
    %228 = vmatpush1.xpose.msra.mxu0 0.0
    %229 = vmatprep.subr.mxu0 0.0
    %230 = vmatpush1.xpose.msra.mxu0 0.0
    %231 = vmatprep.subr.mxu0 0.0
    %232 = vmatpush1.xpose.msra.mxu0 0.0
    %233 = vmatprep.subr.mxu0 0.0
    %234 = vmatpush1.xpose.msra.mxu0 0.0
    %235 = vmatprep.subr.mxu0 0.0
    %236 = vmatpush1.xpose.msra.mxu0 0.0
    %237 = vmatprep.subr.mxu0 0.0
    %238 = vmatpush1.xpose.msra.mxu0 0.0
    %239 = vmatprep.subr.mxu0 0.0
    %240 = vmatpush1.xpose.msra.mxu0 0.0
    %241 = vmatprep.subr.mxu0 0.0
    %242 = vmatpush1.xpose.msra.mxu0 0.0
    %243 = vmatprep.subr.mxu0 0.0
    %244 = vmatpush1.xpose.msra.mxu0 0.0
    %245 = vmatprep.subr.mxu0 0.0
    %246 = vmatpush1.xpose.msra.mxu0 0.0
    %247 = vmatprep.subr.mxu0 0.0
    %248 = vmatpush1.xpose.msra.mxu0 0.0
    %249 = vmatprep.subr.mxu0 0.0
    %250 = vmatpush1.xpose.msra.mxu0 0.0
    %251 = vmatprep.subr.mxu0 0.0
    %252 = vmatpush1.xpose.msra.mxu0 0.0
    %253 = vmatprep.subr.mxu0 0.0
    %254 = vmatpush1.xpose.msra.mxu0 0.0
    %255 = vmatprep.subr.mxu0 0.0
    %256 = vmatpush1.xpose.msra.mxu0 0.0
    %257 = vmatprep.mubr.f32.mxu0 0.0
    %258 = vmatmul.mubr.f32.gmra.mrb[0].mxu0 %v191
    %v259 = vpop.f32.mrb[0].mxu0
    %v260 = vadd.f32 0.0, %v259
    %v261 = vpop.f32.mrb[0].mxu0
    %262 = vdwg.mxu0
    %vm263 = vcmask 58368
    %264 = vst.msk [vmem:[#allocation6] sm:$0x3] %vm263, %v260
    // Predicated region
    $region22: #{tpu_custom_call.1} parent=1 // pred_check
      _
    $region23: #{tpu_custom_call.1} parent=1 // pred_check_branch
      %266 = sbr.rel (0) target = $region25
    $region24: #{tpu_custom_call.1} parent=1 // pred_region
      %s268 = ssub.s32 128, 128
      %269 = vsyncadd [#allocation4], %s268
      %s271 = sshll.u32 [#allocation5], 4
      %s272 = int_to_ptr.vmem [resolvable:$true] %s271
      %274 = dma.vmem_to_hbm [thread:$0]  %s272, 128, %s4, [#allocation4]
    $region25: #{tpu_custom_call.1} parent=1 // pred_fallthru
      _
    // Predicated region
    $region26: #{tpu_custom_call.1} parent=1 // pred_check
      _
    $region27: #{tpu_custom_call.1} parent=1 // pred_check_branch
      %276 = sbr.rel (0) target = $region29
    $region28: #{tpu_custom_call.1} parent=1 // pred_region
      _
    $region29: #{tpu_custom_call.1} parent=1 // pred_fallthru
      _
    // Predicated region
    $region30: #{tpu_custom_call.1} parent=1 // pred_check
      _
    $region31: #{tpu_custom_call.1} parent=1 // pred_check_branch
      %278 = sbr.rel (0) target = $region33
    $region32: #{tpu_custom_call.1} parent=1 // pred_region
      %s280 = ssub.s32 32, 32
      %281 = vsyncadd [#allocation7], %s280
      %s283 = sshll.u32 [#allocation6], 4
      %s284 = int_to_ptr.vmem [resolvable:$true] %s283
      %286 = dma.vmem_to_hbm [thread:$0]  %s284, 32, %s6, [#allocation7]
    $region33: #{tpu_custom_call.1} parent=1 // pred_fallthru
      _
    // Predicated region
    $region34: #{tpu_custom_call.1} parent=1 // pred_check
      _
    $region35: #{tpu_custom_call.1} parent=1 // pred_check_branch
      %288 = sbr.rel (0) target = $region37
    $region36: #{tpu_custom_call.1} parent=1 // pred_region
      %289 = dma.done [#allocation4], 128
    $region37: #{tpu_custom_call.1} parent=1 // pred_fallthru
      _
    // Predicated region
    $region38: #{tpu_custom_call.1} parent=1 // pred_check
      _
    $region39: #{tpu_custom_call.1} parent=1 // pred_check_branch
      %291 = sbr.rel (0) target = $region41
    $region40: #{tpu_custom_call.1} parent=1 // pred_region
      _
    $region41: #{tpu_custom_call.1} parent=1 // pred_fallthru
      _
    // Predicated region
    $region42: #{tpu_custom_call.1} parent=1 // pred_check
      _
    $region43: #{tpu_custom_call.1} parent=1 // pred_check_branch
      %293 = sbr.rel (0) target = $region45
    $region44: #{tpu_custom_call.1} parent=1 // pred_region
      %294 = dma.done [#allocation7], 32
    $region45: #{tpu_custom_call.1} parent=1 // pred_fallthru
      _
    %295 = vsyncpa [#allocation3], 1
    %296 = vsyncpa [#allocation4], 1
    %297 = vsyncpa [#allocation7], 1

</llo_original>
